<compile_context>
chip_gen: v5e
topology: v5e:2x2
jax: 0.10.0
libtpu: 0.0.40
codegen_flags: <defaults>
</compile_context>

<pallas_src>
import jax
import jax.numpy as jnp
from jax.experimental import pallas as pl
from jax.experimental.pallas import tpu as pltpu

STATE_DIM = 5
HIDDEN = 128
OUT = 1

LANE_CHUNK = 512  # in-kernel chunk of batch columns (multiple of 128)


def _round_up(x, m):
    return ((x + m - 1) // m) * m


def valuenet_kernel(xt_ref, w1t_ref, b1_ref, w2_ref, b2_ref, o_ref):
    """One batch tile of TB columns, feature-major.

    xt_ref : (STATE_DIM, TB)   states, batch on lanes
    w1t_ref: (HIDDEN, STATE_DIM)
    b1_ref : (HIDDEN, 1)
    w2_ref : (HIDDEN, 1)
    b2_ref : (1, 1) in SMEM
    o_ref  : (1, TB)
    """
    w1t = w1t_ref[...]
    b1 = b1_ref[...]
    w2 = w2_ref[...]
    b2 = b2_ref[0, 0]

    tb_cols = xt_ref.shape[-1]          # static; always a multiple of LANE_CHUNK
    n_chunks = tb_cols // LANE_CHUNK

    def body(c, carry):
        j = pl.multiple_of(c * LANE_CHUNK, LANE_CHUNK)
        xs = xt_ref[:, pl.ds(j, LANE_CHUNK)]                       # (5, TC)
        # fc1 on the MXU with f32 accumulation; b1 broadcasts across lanes.
        h = jnp.dot(w1t, xs, preferred_element_type=jnp.float32)   # (128, TC)
        h = jnp.maximum(h + b1, 0.0)
        # fc2: VPU broadcast-multiply + sublane reduction (no N=1 MXU matmul).
        v = jnp.sum(h * w2, axis=0, keepdims=True) + b2            # (1, TC)
        o_ref[:, pl.ds(j, LANE_CHUNK)] = v                         # lane-dense store
        return carry

    jax.lax.fori_loop(0, n_chunks, body, None)


def value_net_forward(x, w1, b1, w2, b2, *, tb=65536):
    """x: (B, 5) f32; w1: (5, 128); b1: (1, 128); w2: (128, 1); b2: (1, 1).

    Returns (B, 1), matching ValueNet.forward.
    """
    B = x.shape[0]

    # Feature-major: put the batch on the lane axis.
    # TODO(synk): have the upstream producer emit states as (STATE_DIM, B)
    # directly so this transpose (an extra HBM round trip of x) disappears.
    xt = jnp.transpose(x)                  # (5, B)
    w1t = jnp.transpose(w1)                # (128, 5)
    b1c = b1.reshape(HIDDEN, 1)            # (128, 1)
    w2c = w2.reshape(HIDDEN, 1)            # (128, 1)
    b2s = b2.reshape(1, 1)                 # scalar, lives in SMEM

    # Batch tile: multiple of LANE_CHUNK, capped at tb, and near B/2 so large
    # batches get >=2 grid steps (megacore sharding on v7x).
    tb = max(LANE_CHUNK, (tb // LANE_CHUNK) * LANE_CHUNK)
    TB = min(tb, _round_up(max(B // 2, 1), LANE_CHUNK))
    G = pl.cdiv(B, TB)                     # last block may be partial (no pad of x)
    B_out = G * TB                         # output sized so every store/DMA is full

    flops = 2 * B_out * (STATE_DIM * HIDDEN + HIDDEN)
    bytes_accessed = 4 * (
        STATE_DIM * B + STATE_DIM * HIDDEN + HIDDEN + HIDDEN + 1 + B_out
    )

    out = pl.pallas_call(
        valuenet_kernel,
        out_shape=jax.ShapeDtypeStruct((1, B_out), jnp.float32),
        grid=(G,),
        in_specs=[
            # States: tiled along the batch (lane) axis, pipelined across steps.
            pl.BlockSpec((STATE_DIM, TB), lambda i: (0, i)),
            # Weights/biases: constant index_map -> stay resident in VMEM.
            pl.BlockSpec((HIDDEN, STATE_DIM), lambda i: (0, 0)),
            pl.BlockSpec((HIDDEN, 1), lambda i: (0, 0)),
            pl.BlockSpec((HIDDEN, 1), lambda i: (0, 0)),
            # b2: true scalar in SMEM (no padded (8,128) VMEM tile).
            pl.BlockSpec(memory_space=pltpu.MemorySpace.SMEM),
        ],
        out_specs=pl.BlockSpec((1, TB), lambda i: (0, i)),
        compiler_params=pltpu.CompilerParams(
            dimension_semantics=("parallel",),
            # Within v7x's 64 MiB physical VMEM; raises v5e's 16 MiB default.
            vmem_limit_bytes=48 * 1024 * 1024,
        ),
        cost_estimate=pl.CostEstimate(
            flops=flops, transcendentals=0, bytes_accessed=bytes_accessed
        ),
    )(xt, w1t, b1c, w2c, b2s)

    return out[0, :B].reshape(B, OUT)


def init_params(key):
    # PyTorch-Linear-style uniform init: U(-1/sqrt(fan_in), +1/sqrt(fan_in)).
    k1, k2, k3, k4 = jax.random.split(key, 4)
    bound1 = 1.0 / jnp.sqrt(jnp.float32(STATE_DIM))
    bound2 = 1.0 / jnp.sqrt(jnp.float32(HIDDEN))
    w1 = jax.random.uniform(k1, (STATE_DIM, HIDDEN), jnp.float32, -bound1, bound1)
    b1 = jax.random.uniform(k2, (1, HIDDEN), jnp.float32, -bound1, bound1)
    w2 = jax.random.uniform(k3, (HIDDEN, OUT), jnp.float32, -bound2, bound2)
    b2 = jax.random.uniform(k4, (1, OUT), jnp.float32, -bound2, bound2)
    return w1, b1, w2, b2


if __name__ == "__main__":
    key = jax.random.PRNGKey(0)
    kx, kp = jax.random.split(key)

    B = 8
    x = jax.random.normal(kx, (B, STATE_DIM), jnp.float32)
    w1, b1, w2, b2 = init_params(kp)

    out = jax.block_until_ready(value_net_forward(x, w1, b1, w2, b2))

    # Pure-JAX reference check.
    ref = jnp.maximum(x @ w1 + b1, 0.0) @ w2 + b2
    assert out.shape == (B, OUT), out.shape
    assert jnp.allclose(out, ref, atol=1e-5, rtol=1e-5), "mismatch vs reference"

    # Exercise the multi-step grid and the partial last block (no jnp.pad path).
    B2 = 1000
    x2 = jax.random.normal(jax.random.PRNGKey(1), (B2, STATE_DIM), jnp.float32)
    out2 = jax.block_until_ready(value_net_forward(x2, w1, b1, w2, b2))
    ref2 = jnp.maximum(x2 @ w1 + b1, 0.0) @ w2 + b2
    assert out2.shape == (B2, OUT), out2.shape
    assert jnp.allclose(out2, ref2, atol=1e-5, rtol=1e-5), "tiled mismatch"

    print("KERNEL_OK")
</pallas_src>

<mosaic_0001>
module attributes {stable_mosaic.version = 11 : i64} {
  func.func @valuenet_kernel(%arg0: i32, %arg1: memref<5x512xf32, #tpu.memory_space<vmem>>, %arg2: memref<128x5xf32, #tpu.memory_space<vmem>>, %arg3: memref<128x1xf32, #tpu.memory_space<vmem>>, %arg4: memref<128x1xf32, #tpu.memory_space<vmem>>, %arg5: memref<1x1xf32, #tpu.memory_space<smem>>, %arg6: memref<1x512xf32, #tpu.memory_space<vmem>>) attributes {dimension_semantics = [#tpu.dimension_semantics<parallel>], iteration_bounds = array<i64: 1>, scalar_prefetch = 0 : i64, scratch_operands = 0 : i64, tpu.core_type = #tpu.core_type<tc>, window_params = [{transform_indices = @transform_0, window_bounds = array<i64: 5, 512>}, {pipeline_mode = #tpu.pipeline_mode<synchronous>, transform_indices = @transform_1, window_bounds = array<i64: 128, 5>}, {pipeline_mode = #tpu.pipeline_mode<synchronous>, transform_indices = @transform_2, window_bounds = array<i64: 128, 1>}, {pipeline_mode = #tpu.pipeline_mode<synchronous>, transform_indices = @transform_3, window_bounds = array<i64: 128, 1>}, {transform_indices = @transform_4, window_bounds = array<i64: 1, 1>}, {transform_indices = @transform_5, window_bounds = array<i64: 1, 512>}]} {
    %c0 = arith.constant 0 : index
    %c0_0 = arith.constant 0 : index
    %0 = vector.load %arg2[%c0, %c0_0] : memref<128x5xf32, #tpu.memory_space<vmem>>, vector<128x5xf32>
    %c0_1 = arith.constant 0 : index
    %c0_2 = arith.constant 0 : index
    %1 = vector.load %arg3[%c0_1, %c0_2] : memref<128x1xf32, #tpu.memory_space<vmem>>, vector<128x1xf32>
    %c0_3 = arith.constant 0 : index
    %c0_4 = arith.constant 0 : index
    %2 = vector.load %arg4[%c0_3, %c0_4] : memref<128x1xf32, #tpu.memory_space<vmem>>, vector<128x1xf32>
    %c0_5 = arith.constant 0 : index
    %c0_6 = arith.constant 0 : index
    %3 = memref.load %arg5[%c0_5, %c0_6] : memref<1x1xf32, #tpu.memory_space<smem>>
    %c0_i32 = arith.constant 0 : i32
    %c512_i32 = arith.constant 512 : i32
    %4 = arith.muli %c0_i32, %c512_i32 : i32
    %5 = tpu.assume_multiple %4, 512 : i32
    %c0_7 = arith.constant 0 : index
    %6 = arith.index_cast %5 : i32 to index
    %7 = vector.load %arg1[%c0_7, %6] : memref<5x512xf32, #tpu.memory_space<vmem>>, vector<5x512xf32>
    %cst = arith.constant dense<0.000000e+00> : vector<128x512xf32>
    %8 = tpu.matmul %0, %7, %cst {dimension_numbers = #tpu.dot_dimension_numbers<[1], [0], [0], [1], [0, 0, 1, 1], [], []>} : vector<128x5xf32>, vector<5x512xf32>, vector<128x512xf32> -> vector<128x512xf32>
    %9 = vector.broadcast %1 : vector<128x1xf32> to vector<128x512xf32>
    %10 = arith.addf %8, %9 : vector<128x512xf32>
    %cst_8 = arith.constant 0.000000e+00 : f32
    %11 = vector.broadcast %cst_8 : f32 to vector<128x512xf32>
    %12 = arith.maximumf %10, %11 : vector<128x512xf32>
    %13 = vector.broadcast %2 : vector<128x1xf32> to vector<128x512xf32>
    %14 = arith.mulf %12, %13 : vector<128x512xf32>
    %cst_9 = arith.constant dense<0.000000e+00> : vector<512xf32>
    %15 = vector.multi_reduction <add>, %14, %cst_9 [0] : vector<128x512xf32> to vector<512xf32>
    %16 = vector.shape_cast %15 : vector<512xf32> to vector<1x512xf32>
    %17 = vector.broadcast %3 : f32 to vector<1x512xf32>
    %18 = arith.addf %16, %17 : vector<1x512xf32>
    %c0_10 = arith.constant 0 : index
    %19 = arith.index_cast %5 : i32 to index
    %20 = vector.load %arg6[%c0_10, %19] : memref<1x512xf32, #tpu.memory_space<vmem>>, vector<1x512xf32>
    tpu.vector_store %arg6[%c0_10, %19], %18 {strides = array<i32>} : memref<1x512xf32, #tpu.memory_space<vmem>>, vector<1x512xf32>,
    %c1_i32 = arith.constant 1 : i32
    return
  }
  func.func @transform_0(%arg0: i32) -> (i32, i32) {
    %c0_i32 = arith.constant 0 : i32
    %c0_i32_0 = arith.constant 0 : i32
    return %c0_i32, %arg0 : i32, i32
  }
  func.func @transform_1(%arg0: i32) -> (i32, i32) {
    %c0_i32 = arith.constant 0 : i32
    %c0_i32_0 = arith.constant 0 : i32
    %c0_i32_1 = arith.constant 0 : i32
    return %c0_i32, %c0_i32_0 : i32, i32
  }
  func.func @transform_2(%arg0: i32) -> (i32, i32) {
    %c0_i32 = arith.constant 0 : i32
    %c0_i32_0 = arith.constant 0 : i32
    %c0_i32_1 = arith.constant 0 : i32
    return %c0_i32, %c0_i32_0 : i32, i32
  }
  func.func @transform_3(%arg0: i32) -> (i32, i32) {
    %c0_i32 = arith.constant 0 : i32
    %c0_i32_0 = arith.constant 0 : i32
    %c0_i32_1 = arith.constant 0 : i32
    return %c0_i32, %c0_i32_0 : i32, i32
  }
  func.func @transform_4(%arg0: i32) -> (i32, i32) {
    %c0_i32 = arith.constant 0 : i32
    %c0_i32_0 = arith.constant 0 : i32
    %c0_i32_1 = arith.constant 0 : i32
    return %c0_i32, %c0_i32_0 : i32, i32
  }
  func.func @transform_5(%arg0: i32) -> (i32, i32) {
    %c0_i32 = arith.constant 0 : i32
    %c0_i32_0 = arith.constant 0 : i32
    return %c0_i32, %arg0 : i32, i32
  }
}

</mosaic_0001>

<llo_original>
// kernel: tpu_custom_call.1
$region0: #{tpu_custom_call.1}
  #allocation0 [shape = 'u32[]', space=smem, size = 0x4, offset = 0x4, fixed_abs, tag = 'smem constant byte address 0x4 - core index']
  #allocation1 [shape = 'u32[72,128]{1,0:T(1,128)}', space=vmem, size = 0x9000, scoped, tag = 'internal scratch']
  #allocation2 [shape = 'f32[1,1]{1,0:T(1,128)S(6)}', space=smem, size = 0x200, scoped, tag = 'scoped memory for tpu_custom_call.1']
  %s0 = inlined_call_operand.vmem [shape: f32[5,8], index: 0, kind: input, shape index: {}]
  %s1 = inlined_call_operand.vmem [shape: f32[128,5], index: 1, kind: input, shape index: {}]
  %s2 = inlined_call_operand.vmem [shape: f32[128,1], index: 2, kind: input, shape index: {}]
  %s3 = inlined_call_operand.vmem [shape: f32[128,1], index: 3, kind: input, shape index: {}]
  %s4 = inlined_call_operand.<no memory space> [shape: f32[1,1], index: 4, kind: input, shape index: {}]
  %s5 = inlined_call_operand.hbm [shape: f32[1,512], index: 5, kind: output, shape index: {}]
  %s6 = sld [smem:[#allocation0]]
  $region30: #{tpu_custom_call.1} parent=0
    _
  %s8 = ssub.s32 1, %s6
  %s9 = scalar_select 0, %s8, %s6
  %10 = sst [smem:[#allocation2]] %s4
  $region1: #{tpu_custom_call.1} parent=0
    #allocation3 [shape = 'u8[2048]{0}', space=vmem, size = 0x800, scoped, tag = 'output window, operand 0, single buffered']
    #allocation4 [shape = 's32[1]{0}', space=sflag, size = 0x4, scoped, tag = 'scoped memory for tpu_custom_call.1']
    %11 = vsyncpa [#allocation4], 0
    // Predicated region
    $region2: #{tpu_custom_call.1} parent=1 // pred_check
      _
    $region3: #{tpu_custom_call.1} parent=1 // pred_check_branch
      %13 = sbr.rel (0) target = $region5
    $region4: #{tpu_custom_call.1} parent=1 // pred_region
      _
    $region5: #{tpu_custom_call.1} parent=1 // pred_fallthru
      _
    // Predicated region
    $region6: #{tpu_custom_call.1} parent=1 // pred_check
      _
    $region7: #{tpu_custom_call.1} parent=1 // pred_check_branch
      %15 = sbr.rel (0) target = $region9
    $region8: #{tpu_custom_call.1} parent=1 // pred_region
      _
    $region9: #{tpu_custom_call.1} parent=1 // pred_fallthru
      _
    // Predicated region
    $region10: #{tpu_custom_call.1} parent=1 // pred_check
      _
    $region11: #{tpu_custom_call.1} parent=1 // pred_check_branch
      %17 = sbr.rel (0) target = $region13
    $region12: #{tpu_custom_call.1} parent=1 // pred_region
      _
    $region13: #{tpu_custom_call.1} parent=1 // pred_fallthru
      _
    // Predicated region
    $region14: #{tpu_custom_call.1} parent=1 // pred_check
      _
    $region15: #{tpu_custom_call.1} parent=1 // pred_check_branch
      %19 = sbr.rel (0) target = $region17
    $region16: #{tpu_custom_call.1} parent=1 // pred_region
      _
    $region17: #{tpu_custom_call.1} parent=1 // pred_fallthru
      _
    // Predicated region
    $region18: #{tpu_custom_call.1} parent=1 // pred_check
      _
    $region19: #{tpu_custom_call.1} parent=1 // pred_check_branch
      %21 = sbr.rel (0) target = $region21
    $region20: #{tpu_custom_call.1} parent=1 // pred_region
      _
    $region21: #{tpu_custom_call.1} parent=1 // pred_fallthru
      _
    %v22 = vld [vmem:[%s1] sm:$0xff]
    %v23 = vld [vmem:[%s1 + $0x8] sm:$0xff]
    %v24 = vld [vmem:[%s1 + $0x10] sm:$0xff]
    %v25 = vld [vmem:[%s1 + $0x18] sm:$0xff]
    %v26 = vld [vmem:[%s1 + $0x20] sm:$0xff]
    %v27 = vld [vmem:[%s1 + $0x28] sm:$0xff]
    %v28 = vld [vmem:[%s1 + $0x30] sm:$0xff]
    %v29 = vld [vmem:[%s1 + $0x38] sm:$0xff]
    %v30 = vld [vmem:[%s1 + $0x40] sm:$0xff]
    %v31 = vld [vmem:[%s1 + $0x48] sm:$0xff]
    %v32 = vld [vmem:[%s1 + $0x50] sm:$0xff]
    %v33 = vld [vmem:[%s1 + $0x58] sm:$0xff]
    %v34 = vld [vmem:[%s1 + $0x60] sm:$0xff]
    %v35 = vld [vmem:[%s1 + $0x68] sm:$0xff]
    %v36 = vld [vmem:[%s1 + $0x70] sm:$0xff]
    %v37 = vld [vmem:[%s1 + $0x78] sm:$0xff]
    %v38 = vld [vmem:[%s2] sm:$0xff]
    %v39 = vld [vmem:[%s2 + $0x8] sm:$0xff]
    %v40 = vld [vmem:[%s2 + $0x10] sm:$0xff]
    %v41 = vld [vmem:[%s2 + $0x18] sm:$0xff]
    %v42 = vld [vmem:[%s2 + $0x20] sm:$0xff]
    %v43 = vld [vmem:[%s2 + $0x28] sm:$0xff]
    %v44 = vld [vmem:[%s2 + $0x30] sm:$0xff]
    %v45 = vld [vmem:[%s2 + $0x38] sm:$0xff]
    %v46 = vld [vmem:[%s2 + $0x40] sm:$0xff]
    %v47 = vld [vmem:[%s2 + $0x48] sm:$0xff]
    %v48 = vld [vmem:[%s2 + $0x50] sm:$0xff]
    %v49 = vld [vmem:[%s2 + $0x58] sm:$0xff]
    %v50 = vld [vmem:[%s2 + $0x60] sm:$0xff]
    %v51 = vld [vmem:[%s2 + $0x68] sm:$0xff]
    %v52 = vld [vmem:[%s2 + $0x70] sm:$0xff]
    %v53 = vld [vmem:[%s2 + $0x78] sm:$0xff]
    %v54 = vld [vmem:[%s3] sm:$0xff]
    %v55 = vld [vmem:[%s3 + $0x8] sm:$0xff]
    %v56 = vld [vmem:[%s3 + $0x10] sm:$0xff]
    %v57 = vld [vmem:[%s3 + $0x18] sm:$0xff]
    %v58 = vld [vmem:[%s3 + $0x20] sm:$0xff]
    %v59 = vld [vmem:[%s3 + $0x28] sm:$0xff]
    %v60 = vld [vmem:[%s3 + $0x30] sm:$0xff]
    %v61 = vld [vmem:[%s3 + $0x38] sm:$0xff]
    %v62 = vld [vmem:[%s3 + $0x40] sm:$0xff]
    %v63 = vld [vmem:[%s3 + $0x48] sm:$0xff]
    %v64 = vld [vmem:[%s3 + $0x50] sm:$0xff]
    %v65 = vld [vmem:[%s3 + $0x58] sm:$0xff]
    %v66 = vld [vmem:[%s3 + $0x60] sm:$0xff]
    %v67 = vld [vmem:[%s3 + $0x68] sm:$0xff]
    %v68 = vld [vmem:[%s3 + $0x70] sm:$0xff]
    %v69 = vld [vmem:[%s3 + $0x78] sm:$0xff]
    %s70 = sld [smem:[#allocation2]]
    %v71 = vld [vmem:[%s0] sm:$0x1f]
    %v72 = vld [vmem:[%s0 + $0x8] sm:$0x1f]
    %v73 = vld [vmem:[%s0 + $0x10] sm:$0x1f]
    %v74 = vld [vmem:[%s0 + $0x18] sm:$0x1f]
    %76 = vset.pattern.permute.xlu0 0
    %77 = vperm.xlu0 %76, %v38
    %v78 = vpop.permute.xlu0 %77
    %81 = vset.pattern.permute.xlu0 0
    %82 = vperm.xlu0 %81, %v39
    %v83 = vpop.permute.xlu0 %82
    %86 = vset.pattern.permute.xlu0 0
    %87 = vperm.xlu0 %86, %v40
    %v88 = vpop.permute.xlu0 %87
    %91 = vset.pattern.permute.xlu0 0
    %92 = vperm.xlu0 %91, %v41
    %v93 = vpop.permute.xlu0 %92
    %96 = vset.pattern.permute.xlu0 0
    %97 = vperm.xlu0 %96, %v42
    %v98 = vpop.permute.xlu0 %97
    %101 = vset.pattern.permute.xlu0 0
    %102 = vperm.xlu0 %101, %v43
    %v103 = vpop.permute.xlu0 %102
    %106 = vset.pattern.permute.xlu0 0
    %107 = vperm.xlu0 %106, %v44
    %v108 = vpop.permute.xlu0 %107
    %111 = vset.pattern.permute.xlu0 0
    %112 = vperm.xlu0 %111, %v45
    %v113 = vpop.permute.xlu0 %112
    %116 = vset.pattern.permute.xlu0 0
    %117 = vperm.xlu0 %116, %v46
    %v118 = vpop.permute.xlu0 %117
    %121 = vset.pattern.permute.xlu0 0
    %122 = vperm.xlu0 %121, %v47
    %v123 = vpop.permute.xlu0 %122
    %126 = vset.pattern.permute.xlu0 0
    %127 = vperm.xlu0 %126, %v48
    %v128 = vpop.permute.xlu0 %127
    %131 = vset.pattern.permute.xlu0 0
    %132 = vperm.xlu0 %131, %v49
    %v133 = vpop.permute.xlu0 %132
    %136 = vset.pattern.permute.xlu0 0
    %137 = vperm.xlu0 %136, %v50
    %v138 = vpop.permute.xlu0 %137
    %141 = vset.pattern.permute.xlu0 0
    %142 = vperm.xlu0 %141, %v51
    %v143 = vpop.permute.xlu0 %142
    %146 = vset.pattern.permute.xlu0 0
    %147 = vperm.xlu0 %146, %v52
    %v148 = vpop.permute.xlu0 %147
    %151 = vset.pattern.permute.xlu0 0
    %152 = vperm.xlu0 %151, %v53
    %v153 = vpop.permute.xlu0 %152
    %vm155 = vcmask 39936
    %v157 = vsel %vm155, %v22, 0
    %v160 = vsel %vm155, %v23, 0
    %v163 = vsel %vm155, %v24, 0
    %v166 = vsel %vm155, %v25, 0
    %v169 = vsel %vm155, %v26, 0
    %v172 = vsel %vm155, %v27, 0
    %v175 = vsel %vm155, %v28, 0
    %v178 = vsel %vm155, %v29, 0
    %v181 = vsel %vm155, %v30, 0
    %v184 = vsel %vm155, %v31, 0
    %v187 = vsel %vm155, %v32, 0
    %v190 = vsel %vm155, %v33, 0
    %v193 = vsel %vm155, %v34, 0
    %v196 = vsel %vm155, %v35, 0
    %v199 = vsel %vm155, %v36, 0
    %v202 = vsel %vm155, %v37, 0
    %vm204 = vcmask 1044480
    %v206 = vsel %vm204, %v71, 0
    %v209 = vsel %vm204, %v72, 0
    %v212 = vsel %vm204, %v73, 0
    %v215 = vsel %vm204, %v74, 0
    %217 = vmatpush.msra.mxu0 0.0
    %218 = vmatpush.msra.mxu0 0.0
    %219 = vmatpush.msra.mxu0 0.0
    %220 = vmatpush.msra.mxu0 0.0
    %221 = vmatpush.msra.mxu0 0.0
    %222 = vmatpush.msra.mxu0 0.0
    %223 = vmatpush.msra.mxu0 0.0
    %224 = vmatpush.msra.mxu0 0.0
    %225 = vmatpush.msra.mxu0 0.0
    %226 = vmatpush.msra.mxu0 0.0
    %227 = vmatpush.msra.mxu0 0.0
    %228 = vmatpush.msra.mxu0 0.0
    %229 = vmatpush.msra.mxu0 0.0
    %230 = vmatpush.msra.mxu0 0.0
    %231 = vmatpush.msra.mxu0 0.0
    %232 = vmatpush.msra.mxu0 %v206
    %233 = vmatmul.f32.gmra.mxu0 %v157
    %v234 = vpop.f32.mrf.mxu0
    %v235 = vadd.f32 %v78, %v234
    %236 = vmatmul.f32.gmra.mxu0 %v160
    %v237 = vpop.f32.mrf.mxu0
    %v238 = vadd.f32 %v83, %v237
    %239 = vmatmul.f32.gmra.mxu0 %v163
    %v240 = vpop.f32.mrf.mxu0
    %v241 = vadd.f32 %v88, %v240
    %242 = vmatmul.f32.gmra.mxu0 %v166
    %v243 = vpop.f32.mrf.mxu0
    %v244 = vadd.f32 %v93, %v243
    %245 = vmatmul.f32.gmra.mxu0 %v169
    %v246 = vpop.f32.mrf.mxu0
    %v247 = vadd.f32 %v98, %v246
    %248 = vmatmul.f32.gmra.mxu0 %v172
    %v249 = vpop.f32.mrf.mxu0
    %v250 = vadd.f32 %v103, %v249
    %251 = vmatmul.f32.gmra.mxu0 %v175
    %v252 = vpop.f32.mrf.mxu0
    %v253 = vadd.f32 %v108, %v252
    %254 = vmatmul.f32.gmra.mxu0 %v178
    %v255 = vpop.f32.mrf.mxu0
    %v256 = vadd.f32 %v113, %v255
    %257 = vmatmul.f32.gmra.mxu0 %v181
    %v258 = vpop.f32.mrf.mxu0
    %v259 = vadd.f32 %v118, %v258
    %260 = vmatmul.f32.gmra.mxu0 %v184
    %v261 = vpop.f32.mrf.mxu0
    %v262 = vadd.f32 %v123, %v261
    %263 = vmatmul.f32.gmra.mxu0 %v187
    %v264 = vpop.f32.mrf.mxu0
    %v265 = vadd.f32 %v128, %v264
    %266 = vmatmul.f32.gmra.mxu0 %v190
    %v267 = vpop.f32.mrf.mxu0
    %v268 = vadd.f32 %v133, %v267
    %269 = vmatmul.f32.gmra.mxu0 %v193
    %v270 = vpop.f32.mrf.mxu0
    %v271 = vadd.f32 %v138, %v270
    %272 = vmatmul.f32.gmra.mxu0 %v196
    %v273 = vpop.f32.mrf.mxu0
    %v274 = vadd.f32 %v143, %v273
    %275 = vmatmul.f32.gmra.mxu0 %v199
    %v276 = vpop.f32.mrf.mxu0
    %v277 = vadd.f32 %v148, %v276
    %278 = vmatmul.f32.gmra.mxu0 %v202
    %v279 = vpop.f32.mrf.mxu0
    %v280 = vadd.f32 %v153, %v279
    %281 = vdwg.mxu0
    %282 = vmatpush.msra.mxu0 0.0
    %283 = vmatpush.msra.mxu0 0.0
    %284 = vmatpush.msra.mxu0 0.0
    %285 = vmatpush.msra.mxu0 0.0
    %286 = vmatpush.msra.mxu0 0.0
    %287 = vmatpush.msra.mxu0 0.0
    %288 = vmatpush.msra.mxu0 0.0
    %289 = vmatpush.msra.mxu0 0.0
    %290 = vmatpush.msra.mxu0 0.0
    %291 = vmatpush.msra.mxu0 0.0
    %292 = vmatpush.msra.mxu0 0.0
    %293 = vmatpush.msra.mxu0 0.0
    %294 = vmatpush.msra.mxu0 0.0
    %295 = vmatpush.msra.mxu0 0.0
    %296 = vmatpush.msra.mxu0 0.0
    %297 = vmatpush.msra.mxu0 %v209
    %298 = vmatmul.f32.gmra.mxu0 %v157
    %v299 = vpop.f32.mrf.mxu0
    %v300 = vadd.f32 %v78, %v299
    %301 = vmatmul.f32.gmra.mxu0 %v160
    %v302 = vpop.f32.mrf.mxu0
    %v303 = vadd.f32 %v83, %v302
    %304 = vmatmul.f32.gmra.mxu0 %v163
    %v305 = vpop.f32.mrf.mxu0
    %v306 = vadd.f32 %v88, %v305
    %307 = vmatmul.f32.gmra.mxu0 %v166
    %v308 = vpop.f32.mrf.mxu0
    %v309 = vadd.f32 %v93, %v308
    %310 = vmatmul.f32.gmra.mxu0 %v169
    %v311 = vpop.f32.mrf.mxu0
    %v312 = vadd.f32 %v98, %v311
    %313 = vmatmul.f32.gmra.mxu0 %v172
    %v314 = vpop.f32.mrf.mxu0
    %v315 = vadd.f32 %v103, %v314
    %316 = vmatmul.f32.gmra.mxu0 %v175
    %v317 = vpop.f32.mrf.mxu0
    %v318 = vadd.f32 %v108, %v317
    %319 = vmatmul.f32.gmra.mxu0 %v178
    %v320 = vpop.f32.mrf.mxu0
    %v321 = vadd.f32 %v113, %v320
    %322 = vmatmul.f32.gmra.mxu0 %v181
    %v323 = vpop.f32.mrf.mxu0
    %v324 = vadd.f32 %v118, %v323
    %325 = vmatmul.f32.gmra.mxu0 %v184
    %v326 = vpop.f32.mrf.mxu0
    %v327 = vadd.f32 %v123, %v326
    %328 = vmatmul.f32.gmra.mxu0 %v187
    %v329 = vpop.f32.mrf.mxu0
    %v330 = vadd.f32 %v128, %v329
    %331 = vmatmul.f32.gmra.mxu0 %v190
    %v332 = vpop.f32.mrf.mxu0
    %v333 = vadd.f32 %v133, %v332
    %334 = vmatmul.f32.gmra.mxu0 %v193
    %v335 = vpop.f32.mrf.mxu0
    %v336 = vadd.f32 %v138, %v335
    %337 = vmatmul.f32.gmra.mxu0 %v196
    %v338 = vpop.f32.mrf.mxu0
    %v339 = vadd.f32 %v143, %v338
    %340 = vmatmul.f32.gmra.mxu0 %v199
    %v341 = vpop.f32.mrf.mxu0
    %v342 = vadd.f32 %v148, %v341
    %343 = vmatmul.f32.gmra.mxu0 %v202
    %v344 = vpop.f32.mrf.mxu0
    %v345 = vadd.f32 %v153, %v344
    %346 = vdwg.mxu0
    %347 = vmatpush.msra.mxu0 0.0
    %348 = vmatpush.msra.mxu0 0.0
    %349 = vmatpush.msra.mxu0 0.0
    %350 = vmatpush.msra.mxu0 0.0
    %351 = vmatpush.msra.mxu0 0.0
    %352 = vmatpush.msra.mxu0 0.0
    %353 = vmatpush.msra.mxu0 0.0
    %354 = vmatpush.msra.mxu0 0.0
    %355 = vmatpush.msra.mxu0 0.0
    %356 = vmatpush.msra.mxu0 0.0
    %357 = vmatpush.msra.mxu0 0.0
    %358 = vmatpush.msra.mxu0 0.0
    %359 = vmatpush.msra.mxu0 0.0
    %360 = vmatpush.msra.mxu0 0.0
    %361 = vmatpush.msra.mxu0 0.0
    %362 = vmatpush.msra.mxu0 %v212
    %363 = vmatmul.f32.gmra.mxu0 %v157
    %v364 = vpop.f32.mrf.mxu0
    %v365 = vadd.f32 %v78, %v364
    %366 = vmatmul.f32.gmra.mxu0 %v160
    %v367 = vpop.f32.mrf.mxu0
    %v368 = vadd.f32 %v83, %v367
    %369 = vmatmul.f32.gmra.mxu0 %v163
    %v370 = vpop.f32.mrf.mxu0
    %v371 = vadd.f32 %v88, %v370
    %372 = vmatmul.f32.gmra.mxu0 %v166
    %v373 = vpop.f32.mrf.mxu0
    %v374 = vadd.f32 %v93, %v373
    %375 = vmatmul.f32.gmra.mxu0 %v169
    %v376 = vpop.f32.mrf.mxu0
    %v377 = vadd.f32 %v98, %v376
    %378 = vmatmul.f32.gmra.mxu0 %v172
    %v379 = vpop.f32.mrf.mxu0
    %v380 = vadd.f32 %v103, %v379
    %381 = vmatmul.f32.gmra.mxu0 %v175
    %v382 = vpop.f32.mrf.mxu0
    %v383 = vadd.f32 %v108, %v382
    %384 = vmatmul.f32.gmra.mxu0 %v178
    %v385 = vpop.f32.mrf.mxu0
    %v386 = vadd.f32 %v113, %v385
    %387 = vmatmul.f32.gmra.mxu0 %v181
    %v388 = vpop.f32.mrf.mxu0
    %v389 = vadd.f32 %v118, %v388
    %390 = vmatmul.f32.gmra.mxu0 %v184
    %v391 = vpop.f32.mrf.mxu0
    %v392 = vadd.f32 %v123, %v391
    %393 = vmatmul.f32.gmra.mxu0 %v187
    %v394 = vpop.f32.mrf.mxu0
    %v395 = vadd.f32 %v128, %v394
    %396 = vmatmul.f32.gmra.mxu0 %v190
    %v397 = vpop.f32.mrf.mxu0
    %v398 = vadd.f32 %v133, %v397
    %399 = vmatmul.f32.gmra.mxu0 %v193
    %v400 = vpop.f32.mrf.mxu0
    %v401 = vadd.f32 %v138, %v400
    %402 = vmatmul.f32.gmra.mxu0 %v196
    %v403 = vpop.f32.mrf.mxu0
    %v404 = vadd.f32 %v143, %v403
    %405 = vmatmul.f32.gmra.mxu0 %v199
    %v406 = vpop.f32.mrf.mxu0
    %v407 = vadd.f32 %v148, %v406
    %408 = vmatmul.f32.gmra.mxu0 %v202
    %v409 = vpop.f32.mrf.mxu0
    %v410 = vadd.f32 %v153, %v409
    %411 = vdwg.mxu0
    %412 = vmatpush.msra.mxu0 0.0
    %413 = vmatpush.msra.mxu0 0.0
    %414 = vmatpush.msra.mxu0 0.0
    %415 = vmatpush.msra.mxu0 0.0
    %416 = vmatpush.msra.mxu0 0.0
    %417 = vmatpush.msra.mxu0 0.0
    %418 = vmatpush.msra.mxu0 0.0
    %419 = vmatpush.msra.mxu0 0.0
    %420 = vmatpush.msra.mxu0 0.0
    %421 = vmatpush.msra.mxu0 0.0
    %422 = vmatpush.msra.mxu0 0.0
    %423 = vmatpush.msra.mxu0 0.0
    %424 = vmatpush.msra.mxu0 0.0
    %425 = vmatpush.msra.mxu0 0.0
    %426 = vmatpush.msra.mxu0 0.0
    %427 = vmatpush.msra.mxu0 %v215
    %428 = vmatmul.f32.gmra.mxu0 %v157
    %v429 = vpop.f32.mrf.mxu0
    %v430 = vadd.f32 %v78, %v429
    %431 = vmatmul.f32.gmra.mxu0 %v160
    %v432 = vpop.f32.mrf.mxu0
    %v433 = vadd.f32 %v83, %v432
    %434 = vmatmul.f32.gmra.mxu0 %v163
    %v435 = vpop.f32.mrf.mxu0
    %v436 = vadd.f32 %v88, %v435
    %437 = vmatmul.f32.gmra.mxu0 %v166
    %v438 = vpop.f32.mrf.mxu0
    %v439 = vadd.f32 %v93, %v438
    %440 = vmatmul.f32.gmra.mxu0 %v169
    %v441 = vpop.f32.mrf.mxu0
    %v442 = vadd.f32 %v98, %v441
    %443 = vmatmul.f32.gmra.mxu0 %v172
    %v444 = vpop.f32.mrf.mxu0
    %v445 = vadd.f32 %v103, %v444
    %446 = vmatmul.f32.gmra.mxu0 %v175
    %v447 = vpop.f32.mrf.mxu0
    %v448 = vadd.f32 %v108, %v447
    %449 = vmatmul.f32.gmra.mxu0 %v178
    %v450 = vpop.f32.mrf.mxu0
    %v451 = vadd.f32 %v113, %v450
    %452 = vmatmul.f32.gmra.mxu0 %v181
    %v453 = vpop.f32.mrf.mxu0
    %v454 = vadd.f32 %v118, %v453
    %455 = vmatmul.f32.gmra.mxu0 %v184
    %v456 = vpop.f32.mrf.mxu0
    %v457 = vadd.f32 %v123, %v456
    %458 = vmatmul.f32.gmra.mxu0 %v187
    %v459 = vpop.f32.mrf.mxu0
    %v460 = vadd.f32 %v128, %v459
    %461 = vmatmul.f32.gmra.mxu0 %v190
    %v462 = vpop.f32.mrf.mxu0
    %v463 = vadd.f32 %v133, %v462
    %464 = vmatmul.f32.gmra.mxu0 %v193
    %v465 = vpop.f32.mrf.mxu0
    %v466 = vadd.f32 %v138, %v465
    %467 = vmatmul.f32.gmra.mxu0 %v196
    %v468 = vpop.f32.mrf.mxu0
    %v469 = vadd.f32 %v143, %v468
    %470 = vmatmul.f32.gmra.mxu0 %v199
    %v471 = vpop.f32.mrf.mxu0
    %v472 = vadd.f32 %v148, %v471
    %473 = vmatmul.f32.gmra.mxu0 %v202
    %v474 = vpop.f32.mrf.mxu0
    %v475 = vadd.f32 %v153, %v474
    %476 = vdwg.mxu0
    %v477 = vmax.f32 %v235, 0.0
    %v478 = vmax.f32 %v300, 0.0
    %v479 = vmax.f32 %v365, 0.0
    %v480 = vmax.f32 %v430, 0.0
    %v481 = vmax.f32 %v238, 0.0
    %v482 = vmax.f32 %v303, 0.0
    %v483 = vmax.f32 %v368, 0.0
    %v484 = vmax.f32 %v433, 0.0
    %v485 = vmax.f32 %v241, 0.0
    %v486 = vmax.f32 %v306, 0.0
    %v487 = vmax.f32 %v371, 0.0
    %v488 = vmax.f32 %v436, 0.0
    %v489 = vmax.f32 %v244, 0.0
    %v490 = vmax.f32 %v309, 0.0
    %v491 = vmax.f32 %v374, 0.0
    %v492 = vmax.f32 %v439, 0.0
    %v493 = vmax.f32 %v247, 0.0
    %v494 = vmax.f32 %v312, 0.0
    %v495 = vmax.f32 %v377, 0.0
    %v496 = vmax.f32 %v442, 0.0
    %v497 = vmax.f32 %v250, 0.0
    %v498 = vmax.f32 %v315, 0.0
    %v499 = vmax.f32 %v380, 0.0
    %v500 = vmax.f32 %v445, 0.0
    %v501 = vmax.f32 %v253, 0.0
    %v502 = vmax.f32 %v318, 0.0
    %v503 = vmax.f32 %v383, 0.0
    %v504 = vmax.f32 %v448, 0.0
    %v505 = vmax.f32 %v256, 0.0
    %v506 = vmax.f32 %v321, 0.0
    %v507 = vmax.f32 %v386, 0.0
    %v508 = vmax.f32 %v451, 0.0
    %v509 = vmax.f32 %v259, 0.0
    %v510 = vmax.f32 %v324, 0.0
    %v511 = vmax.f32 %v389, 0.0
    %v512 = vmax.f32 %v454, 0.0
    %v513 = vmax.f32 %v262, 0.0
    %v514 = vmax.f32 %v327, 0.0
    %v515 = vmax.f32 %v392, 0.0
    %v516 = vmax.f32 %v457, 0.0
    %v517 = vmax.f32 %v265, 0.0
    %v518 = vmax.f32 %v330, 0.0
    %v519 = vmax.f32 %v395, 0.0
    %v520 = vmax.f32 %v460, 0.0
    %v521 = vmax.f32 %v268, 0.0
    %v522 = vmax.f32 %v333, 0.0
    %v523 = vmax.f32 %v398, 0.0
    %v524 = vmax.f32 %v463, 0.0
    %v525 = vmax.f32 %v271, 0.0
    %v526 = vmax.f32 %v336, 0.0
    %v527 = vmax.f32 %v401, 0.0
    %v528 = vmax.f32 %v466, 0.0
    %v529 = vmax.f32 %v274, 0.0
    %v530 = vmax.f32 %v339, 0.0
    %v531 = vmax.f32 %v404, 0.0
    %v532 = vmax.f32 %v469, 0.0
    %v533 = vmax.f32 %v277, 0.0
    %v534 = vmax.f32 %v342, 0.0
    %v535 = vmax.f32 %v407, 0.0
    %v536 = vmax.f32 %v472, 0.0
    %v537 = vmax.f32 %v280, 0.0
    %v538 = vmax.f32 %v345, 0.0
    %v539 = vmax.f32 %v410, 0.0
    %v540 = vmax.f32 %v475, 0.0
    %542 = vset.pattern.permute.xlu0 0
    %543 = vperm.xlu0 %542, %v54
    %v544 = vpop.permute.xlu0 %543
    %547 = vset.pattern.permute.xlu0 0
    %548 = vperm.xlu0 %547, %v55
    %v549 = vpop.permute.xlu0 %548
    %552 = vset.pattern.permute.xlu0 0
    %553 = vperm.xlu0 %552, %v56
    %v554 = vpop.permute.xlu0 %553
    %557 = vset.pattern.permute.xlu0 0
    %558 = vperm.xlu0 %557, %v57
    %v559 = vpop.permute.xlu0 %558
    %562 = vset.pattern.permute.xlu0 0
    %563 = vperm.xlu0 %562, %v58
    %v564 = vpop.permute.xlu0 %563
    %567 = vset.pattern.permute.xlu0 0
    %568 = vperm.xlu0 %567, %v59
    %v569 = vpop.permute.xlu0 %568
    %572 = vset.pattern.permute.xlu0 0
    %573 = vperm.xlu0 %572, %v60
    %v574 = vpop.permute.xlu0 %573
    %577 = vset.pattern.permute.xlu0 0
    %578 = vperm.xlu0 %577, %v61
    %v579 = vpop.permute.xlu0 %578
    %582 = vset.pattern.permute.xlu0 0
    %583 = vperm.xlu0 %582, %v62
    %v584 = vpop.permute.xlu0 %583
    %587 = vset.pattern.permute.xlu0 0
    %588 = vperm.xlu0 %587, %v63
    %v589 = vpop.permute.xlu0 %588
    %592 = vset.pattern.permute.xlu0 0
    %593 = vperm.xlu0 %592, %v64
    %v594 = vpop.permute.xlu0 %593
    %597 = vset.pattern.permute.xlu0 0
    %598 = vperm.xlu0 %597, %v65
    %v599 = vpop.permute.xlu0 %598
    %602 = vset.pattern.permute.xlu0 0
    %603 = vperm.xlu0 %602, %v66
    %v604 = vpop.permute.xlu0 %603
    %607 = vset.pattern.permute.xlu0 0
    %608 = vperm.xlu0 %607, %v67
    %v609 = vpop.permute.xlu0 %608
    %612 = vset.pattern.permute.xlu0 0
    %613 = vperm.xlu0 %612, %v68
    %v614 = vpop.permute.xlu0 %613
    %617 = vset.pattern.permute.xlu0 0
    %618 = vperm.xlu0 %617, %v69
    %v619 = vpop.permute.xlu0 %618
    %v621 = vmul.f32 %v477, %v544
    %v622 = vmul.f32 %v478, %v544
    %v623 = vmul.f32 %v479, %v544
    %v624 = vmul.f32 %v480, %v544
    %v625 = vmul.f32 %v481, %v549
    %v626 = vmul.f32 %v482, %v549
    %v627 = vmul.f32 %v483, %v549
    %v628 = vmul.f32 %v484, %v549
    %v629 = vmul.f32 %v485, %v554
    %v630 = vmul.f32 %v486, %v554
    %v631 = vmul.f32 %v487, %v554
    %v632 = vmul.f32 %v488, %v554
    %v633 = vmul.f32 %v489, %v559
    %v634 = vmul.f32 %v490, %v559
    %v635 = vmul.f32 %v491, %v559
    %v636 = vmul.f32 %v492, %v559
    %v637 = vmul.f32 %v493, %v564
    %v638 = vmul.f32 %v494, %v564
    %v639 = vmul.f32 %v495, %v564
    %v640 = vmul.f32 %v496, %v564
    %v641 = vmul.f32 %v497, %v569
    %v642 = vmul.f32 %v498, %v569
    %v643 = vmul.f32 %v499, %v569
    %v644 = vmul.f32 %v500, %v569
    %v645 = vmul.f32 %v501, %v574
    %v646 = vmul.f32 %v502, %v574
    %v647 = vmul.f32 %v503, %v574
    %v648 = vmul.f32 %v504, %v574
    %v649 = vmul.f32 %v505, %v579
    %v650 = vmul.f32 %v506, %v579
    %v651 = vmul.f32 %v507, %v579
    %v652 = vmul.f32 %v508, %v579
    %v653 = vmul.f32 %v509, %v584
    %v654 = vmul.f32 %v510, %v584
    %v655 = vmul.f32 %v511, %v584
    %v656 = vmul.f32 %v512, %v584
    %v657 = vmul.f32 %v513, %v589
    %v658 = vmul.f32 %v514, %v589
    %v659 = vmul.f32 %v515, %v589
    %v660 = vmul.f32 %v516, %v589
    %v661 = vmul.f32 %v517, %v594
    %v662 = vmul.f32 %v518, %v594
    %v663 = vmul.f32 %v519, %v594
    %v664 = vmul.f32 %v520, %v594
    %v665 = vmul.f32 %v521, %v599
    %v666 = vmul.f32 %v522, %v599
    %v667 = vmul.f32 %v523, %v599
    %v668 = vmul.f32 %v524, %v599
    %v669 = vmul.f32 %v525, %v604
    %v670 = vmul.f32 %v526, %v604
    %v671 = vmul.f32 %v527, %v604
    %v672 = vmul.f32 %v528, %v604
    %v673 = vmul.f32 %v529, %v609
    %v674 = vmul.f32 %v530, %v609
    %v675 = vmul.f32 %v531, %v609
    %v676 = vmul.f32 %v532, %v609
    %v677 = vmul.f32 %v533, %v614
    %v678 = vmul.f32 %v534, %v614
    %v679 = vmul.f32 %v535, %v614
    %v680 = vmul.f32 %v536, %v614
    %v681 = vmul.f32 %v537, %v619
    %v682 = vmul.f32 %v538, %v619
    %v683 = vmul.f32 %v539, %v619
    %v684 = vmul.f32 %v540, %v619
    %v685 = vadd.f32 %v621, %v625
    %v686 = vadd.f32 %v685, %v629
    %v687 = vadd.f32 %v686, %v633
    %v688 = vadd.f32 %v687, %v637
    %v689 = vadd.f32 %v688, %v641
    %v690 = vadd.f32 %v689, %v645
    %v691 = vadd.f32 %v690, %v649
    %v692 = vadd.f32 %v691, %v653
    %v693 = vadd.f32 %v692, %v657
    %v694 = vadd.f32 %v693, %v661
    %v695 = vadd.f32 %v694, %v665
    %v696 = vadd.f32 %v695, %v669
    %v697 = vadd.f32 %v696, %v673
    %v698 = vadd.f32 %v697, %v677
    %v699 = vadd.f32 %v698, %v681
    %v700 = vrot.slane %v699, 4
    %v701 = vadd.f32 %v699, %v700
    %v702 = vrot.slane %v701, 2
    %v703 = vadd.f32 %v701, %v702
    %v704 = vrot.slane %v703, 1
    %v705 = vadd.f32 %v703, %v704
    %v706 = vadd.f32 %v622, %v626
    %v707 = vadd.f32 %v706, %v630
    %v708 = vadd.f32 %v707, %v634
    %v709 = vadd.f32 %v708, %v638
    %v710 = vadd.f32 %v709, %v642
    %v711 = vadd.f32 %v710, %v646
    %v712 = vadd.f32 %v711, %v650
    %v713 = vadd.f32 %v712, %v654
    %v714 = vadd.f32 %v713, %v658
    %v715 = vadd.f32 %v714, %v662
    %v716 = vadd.f32 %v715, %v666
    %v717 = vadd.f32 %v716, %v670
    %v718 = vadd.f32 %v717, %v674
    %v719 = vadd.f32 %v718, %v678
    %v720 = vadd.f32 %v719, %v682
    %v721 = vrot.slane %v720, 4
    %v722 = vadd.f32 %v720, %v721
    %v723 = vrot.slane %v722, 2
    %v724 = vadd.f32 %v722, %v723
    %v725 = vrot.slane %v724, 1
    %v726 = vadd.f32 %v724, %v725
    %v727 = vadd.f32 %v623, %v627
    %v728 = vadd.f32 %v727, %v631
    %v729 = vadd.f32 %v728, %v635
    %v730 = vadd.f32 %v729, %v639
    %v731 = vadd.f32 %v730, %v643
    %v732 = vadd.f32 %v731, %v647
    %v733 = vadd.f32 %v732, %v651
    %v734 = vadd.f32 %v733, %v655
    %v735 = vadd.f32 %v734, %v659
    %v736 = vadd.f32 %v735, %v663
    %v737 = vadd.f32 %v736, %v667
    %v738 = vadd.f32 %v737, %v671
    %v739 = vadd.f32 %v738, %v675
    %v740 = vadd.f32 %v739, %v679
    %v741 = vadd.f32 %v740, %v683
    %v742 = vrot.slane %v741, 4
    %v743 = vadd.f32 %v741, %v742
    %v744 = vrot.slane %v743, 2
    %v745 = vadd.f32 %v743, %v744
    %v746 = vrot.slane %v745, 1
    %v747 = vadd.f32 %v745, %v746
    %v748 = vadd.f32 %v624, %v628
    %v749 = vadd.f32 %v748, %v632
    %v750 = vadd.f32 %v749, %v636
    %v751 = vadd.f32 %v750, %v640
    %v752 = vadd.f32 %v751, %v644
    %v753 = vadd.f32 %v752, %v648
    %v754 = vadd.f32 %v753, %v652
    %v755 = vadd.f32 %v754, %v656
    %v756 = vadd.f32 %v755, %v660
    %v757 = vadd.f32 %v756, %v664
    %v758 = vadd.f32 %v757, %v668
    %v759 = vadd.f32 %v758, %v672
    %v760 = vadd.f32 %v759, %v676
    %v761 = vadd.f32 %v760, %v680
    %v762 = vadd.f32 %v761, %v684
    %v763 = vrot.slane %v762, 4
    %v764 = vadd.f32 %v762, %v763
    %v765 = vrot.slane %v764, 2
    %v766 = vadd.f32 %v764, %v765
    %v767 = vrot.slane %v766, 1
    %v768 = vadd.f32 %v766, %v767
    %v769 = vstv %s70
    %v770 = vadd.f32 %v705, %v769
    %v771 = vadd.f32 %v726, %v769
    %v772 = vadd.f32 %v747, %v769
    %v773 = vadd.f32 %v768, %v769
    %v778 = vrot.slane %v771, 7
    %v779 = vrot.slane %v772, 6
    %v780 = vrot.slane %v773, 5
    %vm781 = vcmask 1040384
    %v782 = vsel %vm781, %v770, %v778
    %vm783 = vcmask 1042434
    %v784 = vsel %vm783, %v779, %v780
    %vm785 = vcmask 1041408
    %v786 = vsel %vm785, %v782, %v784
    %v788 = vlaneseq
    %vm789 = vcmp.ge.s32.totalorder %v788, 0
    %vm790 = vcmp.lt.s32.totalorder %v788, 512
    %vm791 = vmand %vm789, %vm790
    %792 = vst.msk [vmem:[#allocation3] sm:$0xf] %vm791, %v786
    // Predicated region
    $region22: #{tpu_custom_call.1} parent=1 // pred_check
      _
    $region23: #{tpu_custom_call.1} parent=1 // pred_check_branch
      %794 = sbr.rel (0) target = $region25
    $region24: #{tpu_custom_call.1} parent=1 // pred_region
      %796 = vsyncadd [#allocation4], 0
      %s798 = sshll.u32 [#allocation3], 4
      %s799 = int_to_ptr.vmem [resolvable:$true] %s798
      %s800 = sshll.u32 %s5, 4
      %s801 = int_to_ptr.hbm [resolvable:$true] %s800
      %803 = dma.vmem_to_hbm [thread:$0]  %s799, 64, %s801, [#allocation4]
    $region25: #{tpu_custom_call.1} parent=1 // pred_fallthru
      _
    // Predicated region
    $region26: #{tpu_custom_call.1} parent=1 // pred_check
      _
    $region27: #{tpu_custom_call.1} parent=1 // pred_check_branch
      %805 = sbr.rel (0) target = $region29
    $region28: #{tpu_custom_call.1} parent=1 // pred_region
      %807 = dma.done [#allocation4], 64
    $region29: #{tpu_custom_call.1} parent=1 // pred_fallthru
      _
    %808 = vsyncpa [#allocation4], 1

</llo_original>
